<compile_context>
chip_gen: v6e
topology: v6e:2x2x1
jax: 0.10.0
libtpu: 0.0.40
codegen_flags: <defaults>
</compile_context>

<pallas_src>
import functools

import jax
import jax.numpy as jnp
from jax.experimental import pallas as pl
from jax.experimental.pallas import tpu as pltpu

C_IN = 128    # fixed by the Linear layer (128 -> 32)
C_OUT = 32
_LANE = 128


def _fused_kernel(x_ref, w_ref, o_ref, acc_ref, *, hw, inv_hw, ragged):
    # x_ref  : (TN, C_IN, THW)  f32   current (N-tile, HW-tile) of the input
    # w_ref  : (C_IN, C_OUT)    f32   full-resident weight (pre-transposed)
    # o_ref  : (TN, C_OUT)      f32   output block (revisited along the HW axis)
    # acc_ref: (TN, C_IN)       f32   running spatial-sum accumulator (~4 KiB)
    hw_step = pl.program_id(1)

    x = x_ref[...]
    if ragged:  # static flag: hw % thw != 0 -> mask lanes past the true extent
        thw = x_ref.shape[-1]
        lane = jax.lax.broadcasted_iota(jnp.int32, (1, 1, thw), 2)
        x = jnp.where(lane < hw - hw_step * thw, x, 0.0)

    # One cross-lane reduce per grid step (XLU slot; slack in a mem-bound kernel).
    partial = jnp.sum(x, axis=-1)                                  # (TN, C_IN)

    @pl.when(hw_step == 0)
    def _first():
        acc_ref[...] = partial          # no big zero store

    @pl.when(hw_step > 0)
    def _accum():
        acc_ref[...] = acc_ref[...] + partial

    @pl.when(hw_step == pl.num_programs(1) - 1)
    def _finalize():
        # MXU matmul on the summed features; 1/HW scale folded into the tiny
        # (TN, C_OUT) epilogue, then -1 and ReLU.
        y = jnp.dot(acc_ref[...], w_ref[...],
                    preferred_element_type=jnp.float32)            # (TN, C_OUT)
        o_ref[...] = jnp.maximum(y * inv_hw - 1.0, 0.0)


def _round_up(a, b):
    return (a + b - 1) // b * b


def _choose_tiles(n, hw, max_block_bytes):
    """Pick (tn, thw) jointly so the x block (tn, C_IN, thw) fits the budget.

    Constraints:
      * thw multiple of 128 lanes (>= 128), capped at round_up(hw, 128);
        no exact-divisor requirement (ragged tail handled in-kernel).
      * tn multiple of 8 (aligned output stores) or equal to n.
      * keep >= 2 N tiles when N allows it (v7x has 2 TensorCores).
    """
    hw_lanes = _round_up(hw, _LANE)
    lane_bytes = C_IN * 4                          # bytes per (1 n, all C, 1 lane)

    tn = 8 if n >= 8 else n
    thw = max(_LANE, (max_block_bytes // (tn * lane_bytes)) // _LANE * _LANE)
    thw = min(thw, hw_lanes)

    # If one HW step already covers the whole spatial extent, spend the
    # leftover budget on a taller N tile instead of leaving a tiny block.
    if thw == hw_lanes and n > tn:
        tn_budget = max(8, max_block_bytes // (lane_bytes * thw))
        if n >= 16:
            # cap so the parallel N axis still has >= 2 tiles (v7x megacore)
            tn_cap = max(8, _round_up(pl.cdiv(n, 2), 8))
        else:
            tn_cap = 8
        tn_new = min(tn_budget, tn_cap, n)
        tn_new = n if tn_new >= n else (tn_new // 8) * 8
        tn = max(tn, tn_new)
    # NOTE: for 2 <= n <= 8 the parallel axis has a single tile; splitting the
    # HW range per core would need a 2-partial combine epilogue (not worth it
    # at these sizes).
    return tn, thw


def model_forward(x_nchw: jax.Array, w_t: jax.Array,
                  *, max_block_bytes: int = 8 * 1024 * 1024) -> jax.Array:
    """Forward pass.

    x_nchw: (N, 128, H, W) f32.
    w_t   : (128, 32) f32 — the Linear weight transposed ONCE at init time
            (torch layout is (32, 128); the .T is hoisted out of the hot path).
    """
    n, c, h, w = x_nchw.shape
    assert c == C_IN and w_t.shape == (C_IN, C_OUT)
    hw = h * w

    # Flatten spatial dims only (a metadata reshape; no pad / extra HBM pass).
    x_flat = x_nchw.reshape(n, c, hw)

    tn, thw = _choose_tiles(n, hw, max_block_bytes)
    ragged = (hw % thw) != 0
    grid = (pl.cdiv(n, tn), pl.cdiv(hw, thw))

    cost = pl.CostEstimate(
        flops=n * C_IN * hw + 2 * n * C_IN * C_OUT,
        transcendentals=0,
        bytes_accessed=n * C_IN * hw * 4 + C_IN * C_OUT * 4 + n * C_OUT * 4,
    )

    return pl.pallas_call(
        functools.partial(_fused_kernel, hw=hw, inv_hw=1.0 / float(hw),
                          ragged=ragged),
        out_shape=jax.ShapeDtypeStruct((n, C_OUT), jnp.float32),
        grid=grid,
        in_specs=[
            # x: tiled over (N, HW); HW is the inner reduction axis.
            pl.BlockSpec((tn, C_IN, thw), lambda i, j: (i, 0, j)),
            # weight: tiny -> fully resident, constant index map (no re-DMA).
            pl.BlockSpec((C_IN, C_OUT), lambda i, j: (0, 0)),
        ],
        out_specs=pl.BlockSpec((tn, C_OUT), lambda i, j: (i, 0)),
        scratch_shapes=[pltpu.VMEM((tn, C_IN), jnp.float32)],
        compiler_params=pltpu.CompilerParams(
            dimension_semantics=("parallel", "arbitrary"),
            vmem_limit_bytes=32 * 1024 * 1024,
        ),
        cost_estimate=cost,
    )(x_flat, w_t)


def reference_forward(x_nchw, weight):
    v1 = jnp.mean(x_nchw, axis=(2, 3))
    v2 = v1 @ weight.T
    return jnp.maximum(v2 - 1.0, 0.0)


if __name__ == "__main__":
    key = jax.random.PRNGKey(0)
    kx, kw, kx2 = jax.random.split(key, 3)

    # Deterministic "Linear(128, 32, bias=False)" weight, torch layout (out, in).
    bound = 1.0 / (C_IN ** 0.5)
    weight = jax.random.uniform(kw, (C_OUT, C_IN), dtype=jnp.float32,
                                minval=-bound, maxval=bound)
    w_t = jnp.asarray(weight.T)        # transpose once at init (hoisted)

    # Small shapes consistent with the module: batch=2, C=128 (required by fc),
    # 16x16 spatial.  Shift inputs so the -1 + ReLU path is non-trivial.
    x = 3.0 + jax.random.normal(kx, (2, C_IN, 16, 16), dtype=jnp.float32)
    out = jax.block_until_ready(model_forward(x, w_t))
    ref = reference_forward(x, weight)
    assert out.shape == (2, C_OUT)
    assert jnp.allclose(out, ref, atol=1e-5, rtol=1e-5), "mismatch vs reference"

    # Second check: ragged H*W (17*23 = 391, not a multiple of 128), multiple
    # HW steps (small block budget), and a masked last N tile (N=10, tn=8).
    x2 = 3.0 + jax.random.normal(kx2, (10, C_IN, 17, 23), dtype=jnp.float32)
    out2 = jax.block_until_ready(
        model_forward(x2, w_t, max_block_bytes=512 * 1024))
    ref2 = reference_forward(x2, weight)
    assert out2.shape == (10, C_OUT)
    assert jnp.allclose(out2, ref2, atol=1e-4, rtol=1e-4), "mismatch (tiled path)"

    print("KERNEL_OK")
</pallas_src>

<mosaic_0001>
module attributes {stable_mosaic.version = 11 : i64} {
  func.func @_fused_kernel(%arg0: i32, %arg1: i32, %arg2: memref<2x128x256xf32, #tpu.memory_space<vmem>>, %arg3: memref<128x32xf32, #tpu.memory_space<vmem>>, %arg4: memref<2x32xf32, #tpu.memory_space<vmem>>, %arg5: memref<2x128xf32, #tpu.memory_space<vmem>>) attributes {dimension_semantics = [#tpu.dimension_semantics<parallel>, #tpu.dimension_semantics<arbitrary>], iteration_bounds = array<i64: 1, 1>, scalar_prefetch = 0 : i64, scratch_operands = 1 : i64, tpu.core_type = #tpu.core_type<tc>, window_params = [{transform_indices = @transform_0, window_bounds = array<i64: 2, 128, 256>}, {pipeline_mode = #tpu.pipeline_mode<synchronous>, transform_indices = @transform_1, window_bounds = array<i64: 128, 32>}, {transform_indices = @transform_2, window_bounds = array<i64: 2, 32>}]} {
    %c0 = arith.constant 0 : index
    %c0_0 = arith.constant 0 : index
    %c0_1 = arith.constant 0 : index
    %0 = vector.load %arg2[%c0, %c0_0, %c0_1] : memref<2x128x256xf32, #tpu.memory_space<vmem>>, vector<2x128x256xf32>
    %cst = arith.constant dense<0.000000e+00> : vector<2x128xf32>
    %1 = vector.multi_reduction <add>, %0, %cst [2] : vector<2x128x256xf32> to vector<2x128xf32>
    %c0_i32 = arith.constant 0 : i32
    %2 = arith.cmpi eq, %arg1, %c0_i32 : i32
    %3 = arith.extui %2 : i1 to i32
    %c0_i32_2 = arith.constant 0 : i32
    %4 = arith.cmpi ne, %3, %c0_i32_2 : i32
    scf.if %4 {
      %c0_7 = arith.constant 0 : index
      %c0_8 = arith.constant 0 : index
      %11 = vector.load %arg5[%c0_7, %c0_8] : memref<2x128xf32, #tpu.memory_space<vmem>>, vector<2x128xf32>
      tpu.vector_store %arg5[%c0_7, %c0_8], %1 {strides = array<i32>} : memref<2x128xf32, #tpu.memory_space<vmem>>, vector<2x128xf32>,
    } else {
    }
    %c0_i32_3 = arith.constant 0 : i32
    %5 = arith.cmpi sgt, %arg1, %c0_i32_3 : i32
    %6 = arith.extui %5 : i1 to i32
    %c0_i32_4 = arith.constant 0 : i32
    %7 = arith.cmpi ne, %6, %c0_i32_4 : i32
    scf.if %7 {
      %c0_7 = arith.constant 0 : index
      %c0_8 = arith.constant 0 : index
      %11 = vector.load %arg5[%c0_7, %c0_8] : memref<2x128xf32, #tpu.memory_space<vmem>>, vector<2x128xf32>
      %12 = arith.addf %11, %1 : vector<2x128xf32>
      %c0_9 = arith.constant 0 : index
      %c0_10 = arith.constant 0 : index
      %13 = vector.load %arg5[%c0_9, %c0_10] : memref<2x128xf32, #tpu.memory_space<vmem>>, vector<2x128xf32>
      tpu.vector_store %arg5[%c0_9, %c0_10], %12 {strides = array<i32>} : memref<2x128xf32, #tpu.memory_space<vmem>>, vector<2x128xf32>,
    } else {
    }
    %c0_i32_5 = arith.constant 0 : i32
    %8 = arith.cmpi eq, %arg1, %c0_i32_5 : i32
    %9 = arith.extui %8 : i1 to i32
    %c0_i32_6 = arith.constant 0 : i32
    %10 = arith.cmpi ne, %9, %c0_i32_6 : i32
    scf.if %10 {
      %c0_7 = arith.constant 0 : index
      %c0_8 = arith.constant 0 : index
      %11 = vector.load %arg5[%c0_7, %c0_8] : memref<2x128xf32, #tpu.memory_space<vmem>>, vector<2x128xf32>
      %c0_9 = arith.constant 0 : index
      %c0_10 = arith.constant 0 : index
      %12 = vector.load %arg3[%c0_9, %c0_10] : memref<128x32xf32, #tpu.memory_space<vmem>>, vector<128x32xf32>
      %cst_11 = arith.constant dense<0.000000e+00> : vector<2x32xf32>
      %13 = tpu.matmul %11, %12, %cst_11 {dimension_numbers = #tpu.dot_dimension_numbers<[1], [0], [0], [1], [0, 0, 1, 1], [], []>} : vector<2x128xf32>, vector<128x32xf32>, vector<2x32xf32> -> vector<2x32xf32>
      %cst_12 = arith.constant 3.906250e-03 : f32
      %14 = vector.broadcast %cst_12 : f32 to vector<2x32xf32>
      %15 = arith.mulf %13, %14 : vector<2x32xf32>
      %cst_13 = arith.constant 1.000000e+00 : f32
      %16 = vector.broadcast %cst_13 : f32 to vector<2x32xf32>
      %17 = arith.subf %15, %16 : vector<2x32xf32>
      %cst_14 = arith.constant 0.000000e+00 : f32
      %18 = vector.broadcast %cst_14 : f32 to vector<2x32xf32>
      %19 = arith.maximumf %17, %18 : vector<2x32xf32>
      %c0_15 = arith.constant 0 : index
      %c0_16 = arith.constant 0 : index
      %20 = vector.load %arg4[%c0_15, %c0_16] : memref<2x32xf32, #tpu.memory_space<vmem>>, vector<2x32xf32>
      tpu.vector_store %arg4[%c0_15, %c0_16], %19 {strides = array<i32>} : memref<2x32xf32, #tpu.memory_space<vmem>>, vector<2x32xf32>,
    } else {
    }
    return
  }
  func.func @transform_0(%arg0: i32, %arg1: i32) -> (i32, i32, i32) {
    %c0_i32 = arith.constant 0 : i32
    %c0_i32_0 = arith.constant 0 : i32
    return %arg0, %c0_i32, %arg1 : i32, i32, i32
  }
  func.func @transform_1(%arg0: i32, %arg1: i32) -> (i32, i32) {
    %c0_i32 = arith.constant 0 : i32
    %c0_i32_0 = arith.constant 0 : i32
    %c0_i32_1 = arith.constant 0 : i32
    return %c0_i32, %c0_i32_0 : i32, i32
  }
  func.func @transform_2(%arg0: i32, %arg1: i32) -> (i32, i32) {
    %c0_i32 = arith.constant 0 : i32
    %c0_i32_0 = arith.constant 0 : i32
    return %arg0, %c0_i32 : i32, i32
  }
}

</mosaic_0001>

<llo_original>
// kernel: tpu_custom_call.1
$region0: #{tpu_custom_call.1}
  #allocation0 [shape = 'u32[]', space=smem, size = 0x4, offset = 0x4, fixed_abs, tag = 'smem constant byte address 0x4 - core index']
  #allocation1 [shape = 'u32[144,128]{1,0:T(1,128)}', space=vmem, size = 0x12000, scoped, tag = 'internal scratch']
  #allocation2 [shape = 'f32[2,128]{1,0:T(2,128)}', space=vmem, size = 0x400, scoped, tag = 'scratch operand']
  %s0 = inlined_call_operand.hbm [shape: f32[2,128,256], index: 0, kind: input, shape index: {}]
  %s1 = inlined_call_operand.vmem [shape: f32[128,32], index: 1, kind: input, shape index: {}]
  %s2 = inlined_call_operand.hbm [shape: f32[2,32], index: 2, kind: output, shape index: {}]
  %s3 = sld [smem:[#allocation0]]
  $region34: #{tpu_custom_call.1} parent=0
    _
  %s5 = ssub.s32 1, %s3
  %s6 = scalar_select 0, %s5, %s3
  $region1: #{tpu_custom_call.1} parent=0
    #allocation3 [shape = 'u8[262144]{0}', space=vmem, size = 0x40000, scoped, tag = 'input window, operand 0, single buffered']
    #allocation4 [shape = 's32[1]{0}', space=sflag, size = 0x4, scoped, tag = 'scoped memory for tpu_custom_call.1']
    #allocation5 [shape = 's32[1]{0}', space=sflag, size = 0x4, scoped, tag = 'scoped memory for tpu_custom_call.1']
    #allocation6 [shape = 'u8[1024]{0}', space=vmem, size = 0x400, scoped, tag = 'output window, operand 0, single buffered']
    %7 = vsyncpa [#allocation4], 0
    %8 = vsyncpa [#allocation5], 0
    // Predicated region
    $region2: #{tpu_custom_call.1} parent=1 // pred_check
      _
    $region3: #{tpu_custom_call.1} parent=1 // pred_check_branch
      %10 = sbr.rel (0) target = $region5
    $region4: #{tpu_custom_call.1} parent=1 // pred_region
      %s12 = ssub.s32 8192, 8192
      %13 = vsyncadd [#allocation4], %s12
      %s14 = sshll.u32 [#allocation3], 4
      %s15 = int_to_ptr.vmem [resolvable:$true] %s14
      %20 = dma.hbm_to_vmem [thread:$0]  %s0, 8192, %s15, [#allocation4], 256, 256, 16
    $region5: #{tpu_custom_call.1} parent=1 // pred_fallthru
      _
    // Predicated region
    $region6: #{tpu_custom_call.1} parent=1 // pred_check
      _
    $region7: #{tpu_custom_call.1} parent=1 // pred_check_branch
      %22 = sbr.rel (0) target = $region9
    $region8: #{tpu_custom_call.1} parent=1 // pred_region
      _
    $region9: #{tpu_custom_call.1} parent=1 // pred_fallthru
      _
    // Predicated region
    $region10: #{tpu_custom_call.1} parent=1 // pred_check
      _
    $region11: #{tpu_custom_call.1} parent=1 // pred_check_branch
      %24 = sbr.rel (0) target = $region13
    $region12: #{tpu_custom_call.1} parent=1 // pred_region
      %25 = dma.done [#allocation4], 8192
    $region13: #{tpu_custom_call.1} parent=1 // pred_fallthru
      _
    %v26 = vld [vmem:[#allocation3] sm:$0xff]
    %v27 = vld [vmem:[#allocation3 + $0x8] sm:$0xff]
    %v28 = vld [vmem:[#allocation3 + $0x10] sm:$0xff]
    %v29 = vld [vmem:[#allocation3 + $0x18] sm:$0xff]
    %v30 = vld [vmem:[#allocation3 + $0x20] sm:$0xff]
    %v31 = vld [vmem:[#allocation3 + $0x28] sm:$0xff]
    %v32 = vld [vmem:[#allocation3 + $0x30] sm:$0xff]
    %v33 = vld [vmem:[#allocation3 + $0x38] sm:$0xff]
    %v34 = vld [vmem:[#allocation3 + $0x40] sm:$0xff]
    %v35 = vld [vmem:[#allocation3 + $0x48] sm:$0xff]
    %v36 = vld [vmem:[#allocation3 + $0x50] sm:$0xff]
    %v37 = vld [vmem:[#allocation3 + $0x58] sm:$0xff]
    %v38 = vld [vmem:[#allocation3 + $0x60] sm:$0xff]
    %v39 = vld [vmem:[#allocation3 + $0x68] sm:$0xff]
    %v40 = vld [vmem:[#allocation3 + $0x70] sm:$0xff]
    %v41 = vld [vmem:[#allocation3 + $0x78] sm:$0xff]
    %v42 = vld [vmem:[#allocation3 + $0x80] sm:$0xff]
    %v43 = vld [vmem:[#allocation3 + $0x88] sm:$0xff]
    %v44 = vld [vmem:[#allocation3 + $0x90] sm:$0xff]
    %v45 = vld [vmem:[#allocation3 + $0x98] sm:$0xff]
    %v46 = vld [vmem:[#allocation3 + $0xa0] sm:$0xff]
    %v47 = vld [vmem:[#allocation3 + $0xa8] sm:$0xff]
    %v48 = vld [vmem:[#allocation3 + $0xb0] sm:$0xff]
    %v49 = vld [vmem:[#allocation3 + $0xb8] sm:$0xff]
    %v50 = vld [vmem:[#allocation3 + $0xc0] sm:$0xff]
    %v51 = vld [vmem:[#allocation3 + $0xc8] sm:$0xff]
    %v52 = vld [vmem:[#allocation3 + $0xd0] sm:$0xff]
    %v53 = vld [vmem:[#allocation3 + $0xd8] sm:$0xff]
    %v54 = vld [vmem:[#allocation3 + $0xe0] sm:$0xff]
    %v55 = vld [vmem:[#allocation3 + $0xe8] sm:$0xff]
    %v56 = vld [vmem:[#allocation3 + $0xf0] sm:$0xff]
    %v57 = vld [vmem:[#allocation3 + $0xf8] sm:$0xff]
    %v58 = vld [vmem:[#allocation3 + $0x100] sm:$0xff]
    %v59 = vld [vmem:[#allocation3 + $0x108] sm:$0xff]
    %v60 = vld [vmem:[#allocation3 + $0x110] sm:$0xff]
    %v61 = vld [vmem:[#allocation3 + $0x118] sm:$0xff]
    %v62 = vld [vmem:[#allocation3 + $0x120] sm:$0xff]
    %v63 = vld [vmem:[#allocation3 + $0x128] sm:$0xff]
    %v64 = vld [vmem:[#allocation3 + $0x130] sm:$0xff]
    %v65 = vld [vmem:[#allocation3 + $0x138] sm:$0xff]
    %v66 = vld [vmem:[#allocation3 + $0x140] sm:$0xff]
    %v67 = vld [vmem:[#allocation3 + $0x148] sm:$0xff]
    %v68 = vld [vmem:[#allocation3 + $0x150] sm:$0xff]
    %v69 = vld [vmem:[#allocation3 + $0x158] sm:$0xff]
    %v70 = vld [vmem:[#allocation3 + $0x160] sm:$0xff]
    %v71 = vld [vmem:[#allocation3 + $0x168] sm:$0xff]
    %v72 = vld [vmem:[#allocation3 + $0x170] sm:$0xff]
    %v73 = vld [vmem:[#allocation3 + $0x178] sm:$0xff]
    %v74 = vld [vmem:[#allocation3 + $0x180] sm:$0xff]
    %v75 = vld [vmem:[#allocation3 + $0x188] sm:$0xff]
    %v76 = vld [vmem:[#allocation3 + $0x190] sm:$0xff]
    %v77 = vld [vmem:[#allocation3 + $0x198] sm:$0xff]
    %v78 = vld [vmem:[#allocation3 + $0x1a0] sm:$0xff]
    %v79 = vld [vmem:[#allocation3 + $0x1a8] sm:$0xff]
    %v80 = vld [vmem:[#allocation3 + $0x1b0] sm:$0xff]
    %v81 = vld [vmem:[#allocation3 + $0x1b8] sm:$0xff]
    %v82 = vld [vmem:[#allocation3 + $0x1c0] sm:$0xff]
    %v83 = vld [vmem:[#allocation3 + $0x1c8] sm:$0xff]
    %v84 = vld [vmem:[#allocation3 + $0x1d0] sm:$0xff]
    %v85 = vld [vmem:[#allocation3 + $0x1d8] sm:$0xff]
    %v86 = vld [vmem:[#allocation3 + $0x1e0] sm:$0xff]
    %v87 = vld [vmem:[#allocation3 + $0x1e8] sm:$0xff]
    %v88 = vld [vmem:[#allocation3 + $0x1f0] sm:$0xff]
    %v89 = vld [vmem:[#allocation3 + $0x1f8] sm:$0xff]
    %v90 = vadd.f32 %v26, %v27
    %91 = vadd.xlane.f32.xlu0 %v90
    %v92 = vpop.xlane.xlu0 %91
    %v93 = vadd.f32 %v28, %v29
    %94 = vadd.xlane.f32.xlu0 %v93
    %v95 = vpop.xlane.xlu0 %94
    %v96 = vadd.f32 %v30, %v31
    %97 = vadd.xlane.f32.xlu0 %v96
    %v98 = vpop.xlane.xlu0 %97
    %v99 = vadd.f32 %v32, %v33
    %100 = vadd.xlane.f32.xlu0 %v99
    %v101 = vpop.xlane.xlu0 %100
    %v102 = vadd.f32 %v34, %v35
    %103 = vadd.xlane.f32.xlu0 %v102
    %v104 = vpop.xlane.xlu0 %103
    %v105 = vadd.f32 %v36, %v37
    %106 = vadd.xlane.f32.xlu0 %v105
    %v107 = vpop.xlane.xlu0 %106
    %v108 = vadd.f32 %v38, %v39
    %109 = vadd.xlane.f32.xlu0 %v108
    %v110 = vpop.xlane.xlu0 %109
    %v111 = vadd.f32 %v40, %v41
    %112 = vadd.xlane.f32.xlu0 %v111
    %v113 = vpop.xlane.xlu0 %112
    %v114 = vadd.f32 %v42, %v43
    %115 = vadd.xlane.f32.xlu0 %v114
    %v116 = vpop.xlane.xlu0 %115
    %v117 = vadd.f32 %v44, %v45
    %118 = vadd.xlane.f32.xlu0 %v117
    %v119 = vpop.xlane.xlu0 %118
    %v120 = vadd.f32 %v46, %v47
    %121 = vadd.xlane.f32.xlu0 %v120
    %v122 = vpop.xlane.xlu0 %121
    %v123 = vadd.f32 %v48, %v49
    %124 = vadd.xlane.f32.xlu0 %v123
    %v125 = vpop.xlane.xlu0 %124
    %v126 = vadd.f32 %v50, %v51
    %127 = vadd.xlane.f32.xlu0 %v126
    %v128 = vpop.xlane.xlu0 %127
    %v129 = vadd.f32 %v52, %v53
    %130 = vadd.xlane.f32.xlu0 %v129
    %v131 = vpop.xlane.xlu0 %130
    %v132 = vadd.f32 %v54, %v55
    %133 = vadd.xlane.f32.xlu0 %v132
    %v134 = vpop.xlane.xlu0 %133
    %v135 = vadd.f32 %v56, %v57
    %136 = vadd.xlane.f32.xlu0 %v135
    %v137 = vpop.xlane.xlu0 %136
    %v138 = vadd.f32 %v58, %v59
    %139 = vadd.xlane.f32.xlu0 %v138
    %v140 = vpop.xlane.xlu0 %139
    %v141 = vadd.f32 %v60, %v61
    %142 = vadd.xlane.f32.xlu0 %v141
    %v143 = vpop.xlane.xlu0 %142
    %v144 = vadd.f32 %v62, %v63
    %145 = vadd.xlane.f32.xlu0 %v144
    %v146 = vpop.xlane.xlu0 %145
    %v147 = vadd.f32 %v64, %v65
    %148 = vadd.xlane.f32.xlu0 %v147
    %v149 = vpop.xlane.xlu0 %148
    %v150 = vadd.f32 %v66, %v67
    %151 = vadd.xlane.f32.xlu0 %v150
    %v152 = vpop.xlane.xlu0 %151
    %v153 = vadd.f32 %v68, %v69
    %154 = vadd.xlane.f32.xlu0 %v153
    %v155 = vpop.xlane.xlu0 %154
    %v156 = vadd.f32 %v70, %v71
    %157 = vadd.xlane.f32.xlu0 %v156
    %v158 = vpop.xlane.xlu0 %157
    %v159 = vadd.f32 %v72, %v73
    %160 = vadd.xlane.f32.xlu0 %v159
    %v161 = vpop.xlane.xlu0 %160
    %v162 = vadd.f32 %v74, %v75
    %163 = vadd.xlane.f32.xlu0 %v162
    %v164 = vpop.xlane.xlu0 %163
    %v165 = vadd.f32 %v76, %v77
    %166 = vadd.xlane.f32.xlu0 %v165
    %v167 = vpop.xlane.xlu0 %166
    %v168 = vadd.f32 %v78, %v79
    %169 = vadd.xlane.f32.xlu0 %v168
    %v170 = vpop.xlane.xlu0 %169
    %v171 = vadd.f32 %v80, %v81
    %172 = vadd.xlane.f32.xlu0 %v171
    %v173 = vpop.xlane.xlu0 %172
    %v174 = vadd.f32 %v82, %v83
    %175 = vadd.xlane.f32.xlu0 %v174
    %v176 = vpop.xlane.xlu0 %175
    %v177 = vadd.f32 %v84, %v85
    %178 = vadd.xlane.f32.xlu0 %v177
    %v179 = vpop.xlane.xlu0 %178
    %v180 = vadd.f32 %v86, %v87
    %181 = vadd.xlane.f32.xlu0 %v180
    %v182 = vpop.xlane.xlu0 %181
    %v183 = vadd.f32 %v88, %v89
    %184 = vadd.xlane.f32.xlu0 %v183
    %v185 = vpop.xlane.xlu0 %184
    %p186 = scmp.eq.s32.totalorder 0, 0
    // Predicated region
    $region14: #{tpu_custom_call.1} parent=1 // pred_check
      %p187 = pneg %p186
    $region15: #{tpu_custom_call.1} parent=1 // pred_check_branch
      %189 = sbr.rel (%p187) target = $region17
    $region16: #{tpu_custom_call.1} parent=1 // pred_region
      %v222 = vlaneseq
      %v223 = vand.u32 %v222, 127
      %v224 = vlaneseq
      %v225 = vshrl.u32 %v224, 7
      %v226 = vsub.s32 %v223, %v225
      %v227 = vrot.slane %v92, %v226
      %v228 = vadd.s32 %v223, 4294967288
      %v229 = vlaneseq
      %v230 = vshrl.u32 %v229, 7
      %v231 = vsub.s32 %v228, %v230
      %v232 = vrot.slane %v95, %v231
      %vm233 = vcmask 130112
      %v234 = vsel %vm233, %v232, %v227
      %v235 = vadd.s32 %v223, 4294967280
      %v236 = vlaneseq
      %v237 = vshrl.u32 %v236, 7
      %v238 = vsub.s32 %v235, %v237
      %v239 = vrot.slane %v98, %v238
      %vm240 = vcmask 195712
      %v241 = vsel %vm240, %v239, %v234
      %v242 = vadd.s32 %v223, 4294967272
      %v243 = vlaneseq
      %v244 = vshrl.u32 %v243, 7
      %v245 = vsub.s32 %v242, %v244
      %v246 = vrot.slane %v101, %v245
      %vm247 = vcmask 261312
      %v248 = vsel %vm247, %v246, %v241
      %v249 = vadd.s32 %v223, 4294967264
      %v250 = vlaneseq
      %v251 = vshrl.u32 %v250, 7
      %v252 = vsub.s32 %v249, %v251
      %v253 = vrot.slane %v104, %v252
      %vm254 = vcmask 326912
      %v255 = vsel %vm254, %v253, %v248
      %v256 = vadd.s32 %v223, 4294967256
      %v257 = vlaneseq
      %v258 = vshrl.u32 %v257, 7
      %v259 = vsub.s32 %v256, %v258
      %v260 = vrot.slane %v107, %v259
      %vm261 = vcmask 392512
      %v262 = vsel %vm261, %v260, %v255
      %v263 = vadd.s32 %v223, 4294967248
      %v264 = vlaneseq
      %v265 = vshrl.u32 %v264, 7
      %v266 = vsub.s32 %v263, %v265
      %v267 = vrot.slane %v110, %v266
      %vm268 = vcmask 458112
      %v269 = vsel %vm268, %v267, %v262
      %v270 = vadd.s32 %v223, 4294967240
      %v271 = vlaneseq
      %v272 = vshrl.u32 %v271, 7
      %v273 = vsub.s32 %v270, %v272
      %v274 = vrot.slane %v113, %v273
      %vm275 = vcmask 523712
      %v276 = vsel %vm275, %v274, %v269
      %v277 = vadd.s32 %v223, 4294967232
      %v278 = vlaneseq
      %v279 = vshrl.u32 %v278, 7
      %v280 = vsub.s32 %v277, %v279
      %v281 = vrot.slane %v116, %v280
      %vm282 = vcmask 589312
      %v283 = vsel %vm282, %v281, %v276
      %v284 = vadd.s32 %v223, 4294967224
      %v285 = vlaneseq
      %v286 = vshrl.u32 %v285, 7
      %v287 = vsub.s32 %v284, %v286
      %v288 = vrot.slane %v119, %v287
      %vm289 = vcmask 654912
      %v290 = vsel %vm289, %v288, %v283
      %v291 = vadd.s32 %v223, 4294967216
      %v292 = vlaneseq
      %v293 = vshrl.u32 %v292, 7
      %v294 = vsub.s32 %v291, %v293
      %v295 = vrot.slane %v122, %v294
      %vm296 = vcmask 720512
      %v297 = vsel %vm296, %v295, %v290
      %v298 = vadd.s32 %v223, 4294967208
      %v299 = vlaneseq
      %v300 = vshrl.u32 %v299, 7
      %v301 = vsub.s32 %v298, %v300
      %v302 = vrot.slane %v125, %v301
      %vm303 = vcmask 786112
      %v304 = vsel %vm303, %v302, %v297
      %v305 = vadd.s32 %v223, 4294967200
      %v306 = vlaneseq
      %v307 = vshrl.u32 %v306, 7
      %v308 = vsub.s32 %v305, %v307
      %v309 = vrot.slane %v128, %v308
      %vm310 = vcmask 851712
      %v311 = vsel %vm310, %v309, %v304
      %v312 = vadd.s32 %v223, 4294967192
      %v313 = vlaneseq
      %v314 = vshrl.u32 %v313, 7
      %v315 = vsub.s32 %v312, %v314
      %v316 = vrot.slane %v131, %v315
      %vm317 = vcmask 917312
      %v318 = vsel %vm317, %v316, %v311
      %v319 = vadd.s32 %v223, 4294967184
      %v320 = vlaneseq
      %v321 = vshrl.u32 %v320, 7
      %v322 = vsub.s32 %v319, %v321
      %v323 = vrot.slane %v134, %v322
      %vm324 = vcmask 982912
      %v325 = vsel %vm324, %v323, %v318
      %v326 = vadd.s32 %v223, 4294967176
      %v327 = vlaneseq
      %v328 = vshrl.u32 %v327, 7
      %v329 = vsub.s32 %v326, %v328
      %v330 = vrot.slane %v137, %v329
      %vm331 = vcmask 1048512
      %v332 = vsel %vm331, %v330, %v325
      %v333 = vlaneseq
      %v334 = vshrl.u32 %v333, 7
      %v335 = vsub.s32 %v223, %v334
      %v336 = vrot.slane %v140, %v335
      %v337 = vlaneseq
      %v338 = vshrl.u32 %v337, 7
      %v339 = vsub.s32 %v228, %v338
      %v340 = vrot.slane %v143, %v339
      %v341 = vsel %vm233, %v340, %v336
      %v342 = vlaneseq
      %v343 = vshrl.u32 %v342, 7
      %v344 = vsub.s32 %v235, %v343
      %v345 = vrot.slane %v146, %v344
      %v346 = vsel %vm240, %v345, %v341
      %v347 = vlaneseq
      %v348 = vshrl.u32 %v347, 7
      %v349 = vsub.s32 %v242, %v348
      %v350 = vrot.slane %v149, %v349
      %v351 = vsel %vm247, %v350, %v346
      %v352 = vlaneseq
      %v353 = vshrl.u32 %v352, 7
      %v354 = vsub.s32 %v249, %v353
      %v355 = vrot.slane %v152, %v354
      %v356 = vsel %vm254, %v355, %v351
      %v357 = vlaneseq
      %v358 = vshrl.u32 %v357, 7
      %v359 = vsub.s32 %v256, %v358
      %v360 = vrot.slane %v155, %v359
      %v361 = vsel %vm261, %v360, %v356
      %v362 = vlaneseq
      %v363 = vshrl.u32 %v362, 7
      %v364 = vsub.s32 %v263, %v363
      %v365 = vrot.slane %v158, %v364
      %v366 = vsel %vm268, %v365, %v361
      %v367 = vlaneseq
      %v368 = vshrl.u32 %v367, 7
      %v369 = vsub.s32 %v270, %v368
      %v370 = vrot.slane %v161, %v369
      %v371 = vsel %vm275, %v370, %v366
      %v372 = vlaneseq
      %v373 = vshrl.u32 %v372, 7
      %v374 = vsub.s32 %v277, %v373
      %v375 = vrot.slane %v164, %v374
      %v376 = vsel %vm282, %v375, %v371
      %v377 = vlaneseq
      %v378 = vshrl.u32 %v377, 7
      %v379 = vsub.s32 %v284, %v378
      %v380 = vrot.slane %v167, %v379
      %v381 = vsel %vm289, %v380, %v376
      %v382 = vlaneseq
      %v383 = vshrl.u32 %v382, 7
      %v384 = vsub.s32 %v291, %v383
      %v385 = vrot.slane %v170, %v384
      %v386 = vsel %vm296, %v385, %v381
      %v387 = vlaneseq
      %v388 = vshrl.u32 %v387, 7
      %v389 = vsub.s32 %v298, %v388
      %v390 = vrot.slane %v173, %v389
      %v391 = vsel %vm303, %v390, %v386
      %v392 = vlaneseq
      %v393 = vshrl.u32 %v392, 7
      %v394 = vsub.s32 %v305, %v393
      %v395 = vrot.slane %v176, %v394
      %v396 = vsel %vm310, %v395, %v391
      %v397 = vlaneseq
      %v398 = vshrl.u32 %v397, 7
      %v399 = vsub.s32 %v312, %v398
      %v400 = vrot.slane %v179, %v399
      %v401 = vsel %vm317, %v400, %v396
      %v402 = vlaneseq
      %v403 = vshrl.u32 %v402, 7
      %v404 = vsub.s32 %v319, %v403
      %v405 = vrot.slane %v182, %v404
      %v406 = vsel %vm324, %v405, %v401
      %v407 = vlaneseq
      %v408 = vshrl.u32 %v407, 7
      %v409 = vsub.s32 %v326, %v408
      %v410 = vrot.slane %v185, %v409
      %v411 = vsel %vm331, %v410, %v406
      %vm412 = vcmask 1041409
      %v413 = vsel %vm412, %v411, %v332
      %415 = vst [vmem:[#allocation2] sm:$0x3] %v413
    $region17: #{tpu_custom_call.1} parent=1 // pred_fallthru
      _
    %p416 = scmp.gt.s32.totalorder 0, 0
    // Predicated region
    $region18: #{tpu_custom_call.1} parent=1 // pred_check
      %p417 = pneg %p416
    $region19: #{tpu_custom_call.1} parent=1 // pred_check_branch
      %419 = sbr.rel (%p417) target = $region21
    $region20: #{tpu_custom_call.1} parent=1 // pred_region
      %v420 = vld [vmem:[#allocation2] sm:$0x3]
      %v453 = vlaneseq
      %v454 = vand.u32 %v453, 127
      %v455 = vlaneseq
      %v456 = vshrl.u32 %v455, 7
      %v457 = vsub.s32 %v454, %v456
      %v458 = vrot.slane %v92, %v457
      %v459 = vadd.s32 %v454, 4294967288
      %v460 = vlaneseq
      %v461 = vshrl.u32 %v460, 7
      %v462 = vsub.s32 %v459, %v461
      %v463 = vrot.slane %v95, %v462
      %vm464 = vcmask 130112
      %v465 = vsel %vm464, %v463, %v458
      %v466 = vadd.s32 %v454, 4294967280
      %v467 = vlaneseq
      %v468 = vshrl.u32 %v467, 7
      %v469 = vsub.s32 %v466, %v468
      %v470 = vrot.slane %v98, %v469
      %vm471 = vcmask 195712
      %v472 = vsel %vm471, %v470, %v465
      %v473 = vadd.s32 %v454, 4294967272
      %v474 = vlaneseq
      %v475 = vshrl.u32 %v474, 7
      %v476 = vsub.s32 %v473, %v475
      %v477 = vrot.slane %v101, %v476
      %vm478 = vcmask 261312
      %v479 = vsel %vm478, %v477, %v472
      %v480 = vadd.s32 %v454, 4294967264
      %v481 = vlaneseq
      %v482 = vshrl.u32 %v481, 7
      %v483 = vsub.s32 %v480, %v482
      %v484 = vrot.slane %v104, %v483
      %vm485 = vcmask 326912
      %v486 = vsel %vm485, %v484, %v479
      %v487 = vadd.s32 %v454, 4294967256
      %v488 = vlaneseq
      %v489 = vshrl.u32 %v488, 7
      %v490 = vsub.s32 %v487, %v489
      %v491 = vrot.slane %v107, %v490
      %vm492 = vcmask 392512
      %v493 = vsel %vm492, %v491, %v486
      %v494 = vadd.s32 %v454, 4294967248
      %v495 = vlaneseq
      %v496 = vshrl.u32 %v495, 7
      %v497 = vsub.s32 %v494, %v496
      %v498 = vrot.slane %v110, %v497
      %vm499 = vcmask 458112
      %v500 = vsel %vm499, %v498, %v493
      %v501 = vadd.s32 %v454, 4294967240
      %v502 = vlaneseq
      %v503 = vshrl.u32 %v502, 7
      %v504 = vsub.s32 %v501, %v503
      %v505 = vrot.slane %v113, %v504
      %vm506 = vcmask 523712
      %v507 = vsel %vm506, %v505, %v500
      %v508 = vadd.s32 %v454, 4294967232
      %v509 = vlaneseq
      %v510 = vshrl.u32 %v509, 7
      %v511 = vsub.s32 %v508, %v510
      %v512 = vrot.slane %v116, %v511
      %vm513 = vcmask 589312
      %v514 = vsel %vm513, %v512, %v507
      %v515 = vadd.s32 %v454, 4294967224
      %v516 = vlaneseq
      %v517 = vshrl.u32 %v516, 7
      %v518 = vsub.s32 %v515, %v517
      %v519 = vrot.slane %v119, %v518
      %vm520 = vcmask 654912
      %v521 = vsel %vm520, %v519, %v514
      %v522 = vadd.s32 %v454, 4294967216
      %v523 = vlaneseq
      %v524 = vshrl.u32 %v523, 7
      %v525 = vsub.s32 %v522, %v524
      %v526 = vrot.slane %v122, %v525
      %vm527 = vcmask 720512
      %v528 = vsel %vm527, %v526, %v521
      %v529 = vadd.s32 %v454, 4294967208
      %v530 = vlaneseq
      %v531 = vshrl.u32 %v530, 7
      %v532 = vsub.s32 %v529, %v531
      %v533 = vrot.slane %v125, %v532
      %vm534 = vcmask 786112
      %v535 = vsel %vm534, %v533, %v528
      %v536 = vadd.s32 %v454, 4294967200
      %v537 = vlaneseq
      %v538 = vshrl.u32 %v537, 7
      %v539 = vsub.s32 %v536, %v538
      %v540 = vrot.slane %v128, %v539
      %vm541 = vcmask 851712
      %v542 = vsel %vm541, %v540, %v535
      %v543 = vadd.s32 %v454, 4294967192
      %v544 = vlaneseq
      %v545 = vshrl.u32 %v544, 7
      %v546 = vsub.s32 %v543, %v545
      %v547 = vrot.slane %v131, %v546
      %vm548 = vcmask 917312
      %v549 = vsel %vm548, %v547, %v542
      %v550 = vadd.s32 %v454, 4294967184
      %v551 = vlaneseq
      %v552 = vshrl.u32 %v551, 7
      %v553 = vsub.s32 %v550, %v552
      %v554 = vrot.slane %v134, %v553
      %vm555 = vcmask 982912
      %v556 = vsel %vm555, %v554, %v549
      %v557 = vadd.s32 %v454, 4294967176
      %v558 = vlaneseq
      %v559 = vshrl.u32 %v558, 7
      %v560 = vsub.s32 %v557, %v559
      %v561 = vrot.slane %v137, %v560
      %vm562 = vcmask 1048512
      %v563 = vsel %vm562, %v561, %v556
      %v564 = vlaneseq
      %v565 = vshrl.u32 %v564, 7
      %v566 = vsub.s32 %v454, %v565
      %v567 = vrot.slane %v140, %v566
      %v568 = vlaneseq
      %v569 = vshrl.u32 %v568, 7
      %v570 = vsub.s32 %v459, %v569
      %v571 = vrot.slane %v143, %v570
      %v572 = vsel %vm464, %v571, %v567
      %v573 = vlaneseq
      %v574 = vshrl.u32 %v573, 7
      %v575 = vsub.s32 %v466, %v574
      %v576 = vrot.slane %v146, %v575
      %v577 = vsel %vm471, %v576, %v572
      %v578 = vlaneseq
      %v579 = vshrl.u32 %v578, 7
      %v580 = vsub.s32 %v473, %v579
      %v581 = vrot.slane %v149, %v580
      %v582 = vsel %vm478, %v581, %v577
      %v583 = vlaneseq
      %v584 = vshrl.u32 %v583, 7
      %v585 = vsub.s32 %v480, %v584
      %v586 = vrot.slane %v152, %v585
      %v587 = vsel %vm485, %v586, %v582
      %v588 = vlaneseq
      %v589 = vshrl.u32 %v588, 7
      %v590 = vsub.s32 %v487, %v589
      %v591 = vrot.slane %v155, %v590
      %v592 = vsel %vm492, %v591, %v587
      %v593 = vlaneseq
      %v594 = vshrl.u32 %v593, 7
      %v595 = vsub.s32 %v494, %v594
      %v596 = vrot.slane %v158, %v595
      %v597 = vsel %vm499, %v596, %v592
      %v598 = vlaneseq
      %v599 = vshrl.u32 %v598, 7
      %v600 = vsub.s32 %v501, %v599
      %v601 = vrot.slane %v161, %v600
      %v602 = vsel %vm506, %v601, %v597
      %v603 = vlaneseq
      %v604 = vshrl.u32 %v603, 7
      %v605 = vsub.s32 %v508, %v604
      %v606 = vrot.slane %v164, %v605
      %v607 = vsel %vm513, %v606, %v602
      %v608 = vlaneseq
      %v609 = vshrl.u32 %v608, 7
      %v610 = vsub.s32 %v515, %v609
      %v611 = vrot.slane %v167, %v610
      %v612 = vsel %vm520, %v611, %v607
      %v613 = vlaneseq
      %v614 = vshrl.u32 %v613, 7
      %v615 = vsub.s32 %v522, %v614
      %v616 = vrot.slane %v170, %v615
      %v617 = vsel %vm527, %v616, %v612
      %v618 = vlaneseq
      %v619 = vshrl.u32 %v618, 7
      %v620 = vsub.s32 %v529, %v619
      %v621 = vrot.slane %v173, %v620
      %v622 = vsel %vm534, %v621, %v617
      %v623 = vlaneseq
      %v624 = vshrl.u32 %v623, 7
      %v625 = vsub.s32 %v536, %v624
      %v626 = vrot.slane %v176, %v625
      %v627 = vsel %vm541, %v626, %v622
      %v628 = vlaneseq
      %v629 = vshrl.u32 %v628, 7
      %v630 = vsub.s32 %v543, %v629
      %v631 = vrot.slane %v179, %v630
      %v632 = vsel %vm548, %v631, %v627
      %v633 = vlaneseq
      %v634 = vshrl.u32 %v633, 7
      %v635 = vsub.s32 %v550, %v634
      %v636 = vrot.slane %v182, %v635
      %v637 = vsel %vm555, %v636, %v632
      %v638 = vlaneseq
      %v639 = vshrl.u32 %v638, 7
      %v640 = vsub.s32 %v557, %v639
      %v641 = vrot.slane %v185, %v640
      %v642 = vsel %vm562, %v641, %v637
      %vm643 = vcmask 1041409
      %v644 = vsel %vm643, %v642, %v563
      %v646 = vadd.f32 %v420, %v644
      %647 = vst [vmem:[#allocation2] sm:$0x3] %v646
    $region21: #{tpu_custom_call.1} parent=1 // pred_fallthru
      _
    // Predicated region
    $region22: #{tpu_custom_call.1} parent=1 // pred_check
      %p648 = pneg %p186
    $region23: #{tpu_custom_call.1} parent=1 // pred_check_branch
      %650 = sbr.rel (%p648) target = $region25
    $region24: #{tpu_custom_call.1} parent=1 // pred_region
      %v651 = vld [vmem:[#allocation2] sm:$0x3]
      %v652 = vld [vmem:[%s1] sm:$0xff]
      %v653 = vld [vmem:[%s1 + $0x8] sm:$0xff]
      %v654 = vld [vmem:[%s1 + $0x10] sm:$0xff]
      %v655 = vld [vmem:[%s1 + $0x18] sm:$0xff]
      %v656 = vld [vmem:[%s1 + $0x20] sm:$0xff]
      %v657 = vld [vmem:[%s1 + $0x28] sm:$0xff]
      %v658 = vld [vmem:[%s1 + $0x30] sm:$0xff]
      %v659 = vld [vmem:[%s1 + $0x38] sm:$0xff]
      %v660 = vld [vmem:[%s1 + $0x40] sm:$0xff]
      %v661 = vld [vmem:[%s1 + $0x48] sm:$0xff]
      %v662 = vld [vmem:[%s1 + $0x50] sm:$0xff]
      %v663 = vld [vmem:[%s1 + $0x58] sm:$0xff]
      %v664 = vld [vmem:[%s1 + $0x60] sm:$0xff]
      %v665 = vld [vmem:[%s1 + $0x68] sm:$0xff]
      %v666 = vld [vmem:[%s1 + $0x70] sm:$0xff]
      %v667 = vld [vmem:[%s1 + $0x78] sm:$0xff]
      %668 = vmatprep.subr.mxu0 0.0
      %669 = vmatpush1.msra.mxu0 %v667
      %670 = vmatprep.subr.mxu0 0.0
      %671 = vmatpush1.msra.mxu0 %v666
      %672 = vmatprep.subr.mxu0 0.0
      %673 = vmatpush1.msra.mxu0 %v665
      %674 = vmatprep.subr.mxu0 0.0
      %675 = vmatpush1.msra.mxu0 %v664
      %676 = vmatprep.subr.mxu0 0.0
      %677 = vmatpush1.msra.mxu0 %v663
      %678 = vmatprep.subr.mxu0 0.0
      %679 = vmatpush1.msra.mxu0 %v662
      %680 = vmatprep.subr.mxu0 0.0
      %681 = vmatpush1.msra.mxu0 %v661
      %682 = vmatprep.subr.mxu0 0.0
      %683 = vmatpush1.msra.mxu0 %v660
      %684 = vmatprep.subr.mxu0 0.0
      %685 = vmatpush1.msra.mxu0 %v659
      %686 = vmatprep.subr.mxu0 0.0
      %687 = vmatpush1.msra.mxu0 %v658
      %688 = vmatprep.subr.mxu0 0.0
      %689 = vmatpush1.msra.mxu0 %v657
      %690 = vmatprep.subr.mxu0 0.0
      %691 = vmatpush1.msra.mxu0 %v656
      %692 = vmatprep.subr.mxu0 0.0
      %693 = vmatpush1.msra.mxu0 %v655
      %694 = vmatprep.subr.mxu0 0.0
      %695 = vmatpush1.msra.mxu0 %v654
      %696 = vmatprep.subr.mxu0 0.0
      %697 = vmatpush1.msra.mxu0 %v653
      %698 = vmatprep.subr.mxu0 0.0
      %699 = vmatpush1.msra.mxu0 %v652
      %700 = vmatprep.subr.mxu0 0.0
      %701 = vmatpush2.msra.mxu0 0.0
      %702 = vmatprep.subr.mxu0 0.0
      %703 = vmatpush2.msra.mxu0 0.0
      %704 = vmatprep.subr.mxu0 0.0
      %705 = vmatpush2.msra.mxu0 0.0
      %706 = vmatprep.subr.mxu0 0.0
      %707 = vmatpush2.msra.mxu0 0.0
      %708 = vmatprep.subr.mxu0 0.0
      %709 = vmatpush2.msra.mxu0 0.0
      %710 = vmatprep.subr.mxu0 0.0
      %711 = vmatpush2.msra.mxu0 0.0
      %712 = vmatprep.subr.mxu0 0.0
      %713 = vmatpush2.msra.mxu0 0.0
      %714 = vmatprep.subr.mxu0 0.0
      %715 = vmatpush2.msra.mxu0 0.0
      %716 = vmatprep.subr.mxu0 0.0
      %717 = vmatpush2.msra.mxu0 0.0
      %718 = vmatprep.subr.mxu0 0.0
      %719 = vmatpush2.msra.mxu0 0.0
      %720 = vmatprep.subr.mxu0 0.0
      %721 = vmatpush2.msra.mxu0 0.0
      %722 = vmatprep.subr.mxu0 0.0
      %723 = vmatpush2.msra.mxu0 0.0
      %724 = vmatprep.subr.mxu0 0.0
      %725 = vmatpush2.msra.mxu0 0.0
      %726 = vmatprep.subr.mxu0 0.0
      %727 = vmatpush2.msra.mxu0 0.0
      %728 = vmatprep.subr.mxu0 0.0
      %729 = vmatpush2.msra.mxu0 0.0
      %730 = vmatprep.subr.mxu0 0.0
      %731 = vmatpush2.msra.mxu0 0.0
      %732 = vmatprep.mubr.f32.mxu0 0.0
      %733 = vmatmul.mubr.f32.gmra.mxu0 %v651
      %v734 = vpop.f32.mrf.mxu0
      %v735 = vadd.f32 0.0, %v734
      %v736 = vpop.f32.mrf.mxu0
      %737 = vdwg.mxu0
      %v738 = vmul.f32 %v735, 0.00390625
      %v739 = vsub.f32 %v738, 1.0
      %v740 = vmax.f32 %v739, 0.0
      %vm741 = vcmask 254976
      %742 = vst.msk [vmem:[#allocation6] sm:$0x3] %vm741, %v740
    $region25: #{tpu_custom_call.1} parent=1 // pred_fallthru
      _
    // Predicated region
    $region26: #{tpu_custom_call.1} parent=1 // pred_check
      _
    $region27: #{tpu_custom_call.1} parent=1 // pred_check_branch
      %744 = sbr.rel (0) target = $region29
    $region28: #{tpu_custom_call.1} parent=1 // pred_region
      %s746 = ssub.s32 32, 32
      %747 = vsyncadd [#allocation5], %s746
      %s749 = sshll.u32 [#allocation6], 4
      %s750 = int_to_ptr.vmem [resolvable:$true] %s749
      %752 = dma.vmem_to_hbm [thread:$0]  %s750, 32, %s2, [#allocation5]
    $region29: #{tpu_custom_call.1} parent=1 // pred_fallthru
      _
    // Predicated region
    $region30: #{tpu_custom_call.1} parent=1 // pred_check
      _
    $region31: #{tpu_custom_call.1} parent=1 // pred_check_branch
      %754 = sbr.rel (0) target = $region33
    $region32: #{tpu_custom_call.1} parent=1 // pred_region
      %755 = dma.done [#allocation5], 32
    $region33: #{tpu_custom_call.1} parent=1 // pred_fallthru
      _
    %756 = vsyncpa [#allocation4], 1
    %757 = vsyncpa [#allocation5], 1

</llo_original>
